<compile_context>
chip_gen: v5e
topology: v5e:2x2
jax: 0.10.0
libtpu: 0.0.40
codegen_flags: <defaults>
</compile_context>

<pallas_src>
import jax
import jax.numpy as jnp
from jax.experimental import pallas as pl
from jax.experimental.pallas import tpu as pltpu


# Packed parameter layout in the f32[32] SMEM array:
#   [0:4)   a_o = 0.5 * w1[o, 0]
#   [4:8)   c_o = 0.5 * w1[o, 1]
#   [8:12)  d_o = 0.5 * b1[o]
#   [12:16) v_o = 0.25 * w2[0, o]
#   [16]    bias2 = 0.25 * sum_o w2[0, o] + 0.5 * b2[0]
#
# Derivation (sigmoid(z) = 0.5*tanh(0.5*z) + 0.5):
#   t_o = tanh(a_o*x0 + c_o*x1 + d_o)          (hidden unit, pre-scaled)
#   y   = 0.5*tanh(sum_o v_o*t_o + bias2) + 0.5
def xornet_kernel(params_ref, x_ref, o_ref):
    x0 = x_ref[0]                    # (TS, TL) f32, dense sublane/lane tile
    x1 = x_ref[1]                    # (TS, TL)

    acc = None
    for o in range(4):               # fully unrolled hidden layer (VPU + EUP only)
        pre = x0 * params_ref[o] + x1 * params_ref[4 + o] + params_ref[8 + o]
        t = jnp.tanh(pre)            # EUP
        term = t * params_ref[12 + o]
        acc = term if acc is None else acc + term

    o_ref[...] = 0.5 * jnp.tanh(acc + params_ref[16]) + 0.5


def xornet_forward(x, w1, b1, w2, b2, *, ts=2048, lanes=128):
    """x: (B, 2) f32.  w1: (4,2), b1: (4,), w2: (1,4), b2: (1,) (torch layout).
    Returns (B, 1) f32."""
    assert ts % 8 == 0, "sublane tile must be a multiple of 8"
    assert lanes % 128 == 0, "lane width must be a multiple of 128"
    B = x.shape[0]

    # Lay the batch out as an (S, lanes) slab; pick the tile's sublane extent so tiny
    # batches still fit one small tile while large batches get ~3 MB/step tiles.
    s_needed = pl.cdiv(B, lanes)
    ts_eff = min(ts, max(8, ((s_needed + 7) // 8) * 8))
    S = pl.cdiv(s_needed, ts_eff) * ts_eff
    Bp = S * lanes

    # Fold all 17 parameters (plus the tanh 0.5 scales) into one SMEM-resident vector.
    w1f = w1.astype(jnp.float32)
    b1f = b1.astype(jnp.float32).reshape(-1)
    w2f = w2.astype(jnp.float32).reshape(-1)
    b2f = b2.astype(jnp.float32).reshape(-1)
    params = jnp.zeros((32,), jnp.float32)
    params = params.at[0:4].set(0.5 * w1f[:, 0])
    params = params.at[4:8].set(0.5 * w1f[:, 1])
    params = params.at[8:12].set(0.5 * b1f)
    params = params.at[12:16].set(0.25 * w2f)
    params = params.at[16].set(0.25 * jnp.sum(w2f) + 0.5 * b2f[0])

    # (B, 2) -> (2, S, lanes), zero-padding the batch tail (padded lanes are sliced
    # off below; they never feed a reduction, so garbage there is harmless).
    xt = jnp.pad(x.astype(jnp.float32).T, ((0, 0), (0, Bp - B))).reshape(2, S, lanes)

    out = pl.pallas_call(
        xornet_kernel,
        out_shape=jax.ShapeDtypeStruct((S, lanes), jnp.float32),
        grid=(S // ts_eff,),
        in_specs=[
            pl.BlockSpec(memory_space=pltpu.MemorySpace.SMEM),        # packed params
            pl.BlockSpec((2, ts_eff, lanes), lambda i: (0, i, 0)),    # dense input tile
        ],
        out_specs=pl.BlockSpec((ts_eff, lanes), lambda i: (i, 0)),    # dense output tile
        compiler_params=pltpu.CompilerParams(
            dimension_semantics=("parallel",)),                       # megacore on v7x
    )(params, xt)

    # Undo the slab layout and restore PyTorch (B, 1).
    return out.reshape(Bp)[:B].reshape(B, 1)


def init_params(key):
    # torch.nn.Linear default init: U(-1/sqrt(fan_in), 1/sqrt(fan_in)), torch layout.
    k1, k2, k3, k4 = jax.random.split(key, 4)
    bound1 = 1.0 / jnp.sqrt(2.0)
    bound2 = 1.0 / jnp.sqrt(4.0)
    w1 = jax.random.uniform(k1, (4, 2), jnp.float32, -bound1, bound1)  # (out=4, in=2)
    b1 = jax.random.uniform(k2, (4,), jnp.float32, -bound1, bound1)
    w2 = jax.random.uniform(k3, (1, 4), jnp.float32, -bound2, bound2)  # (out=1, in=4)
    b2 = jax.random.uniform(k4, (1,), jnp.float32, -bound2, bound2)
    return w1, b1, w2, b2


def reference(x, w1, b1, w2, b2):
    h = jax.nn.sigmoid(x @ w1.T + b1)
    return jax.nn.sigmoid(h @ w2.T + b2)


if __name__ == "__main__":
    key = jax.random.PRNGKey(0)
    pkey, xkey1, xkey2, xkey3 = jax.random.split(key, 4)
    w1, b1, w2, b2 = init_params(pkey)

    # Small batch (single tile).
    x = jax.random.uniform(xkey1, (8, 2), jnp.float32)
    out = xornet_forward(x, w1, b1, w2, b2)
    jax.block_until_ready(out)
    ref = reference(x, w1, b1, w2, b2)
    assert out.shape == (8, 1)
    assert jnp.allclose(out, ref, atol=1e-5, rtol=1e-5), "mismatch vs reference (B=8)"

    # Exercise the pad-then-slice path.
    x2 = jax.random.uniform(xkey2, (300, 2), jnp.float32)
    out2 = xornet_forward(x2, w1, b1, w2, b2)
    jax.block_until_ready(out2)
    ref2 = reference(x2, w1, b1, w2, b2)
    assert out2.shape == (300, 1)
    assert jnp.allclose(out2, ref2, atol=1e-5, rtol=1e-5), "mismatch vs reference (B=300)"

    # Exercise a multi-tile grid (ts forced small so the grid has 3 iterations).
    x3 = jax.random.uniform(xkey3, (2500, 2), jnp.float32)
    out3 = xornet_forward(x3, w1, b1, w2, b2, ts=8)
    jax.block_until_ready(out3)
    ref3 = reference(x3, w1, b1, w2, b2)
    assert out3.shape == (2500, 1)
    assert jnp.allclose(out3, ref3, atol=1e-5, rtol=1e-5), "mismatch vs reference (B=2500)"

    print("KERNEL_OK")
</pallas_src>

<mosaic_0001>
module attributes {stable_mosaic.version = 11 : i64} {
  func.func @xornet_kernel(%arg0: i32, %arg1: memref<32xf32, #tpu.memory_space<smem>>, %arg2: memref<2x8x128xf32, #tpu.memory_space<vmem>>, %arg3: memref<8x128xf32, #tpu.memory_space<vmem>>) attributes {dimension_semantics = [#tpu.dimension_semantics<parallel>], iteration_bounds = array<i64: 1>, scalar_prefetch = 0 : i64, scratch_operands = 0 : i64, tpu.core_type = #tpu.core_type<tc>, window_params = [{transform_indices = @transform_0, window_bounds = array<i64: 32>}, {transform_indices = @transform_1, window_bounds = array<i64: 2, 8, 128>}, {transform_indices = @transform_2, window_bounds = array<i64: 8, 128>}]} {
    %c0 = arith.constant 0 : index
    %c0_0 = arith.constant 0 : index
    %c0_1 = arith.constant 0 : index
    %0 = vector.load %arg2[%c0, %c0_0, %c0_1] : memref<2x8x128xf32, #tpu.memory_space<vmem>>, vector<1x8x128xf32>
    %1 = vector.shape_cast %0 : vector<1x8x128xf32> to vector<8x128xf32>
    %c1 = arith.constant 1 : index
    %c0_2 = arith.constant 0 : index
    %c0_3 = arith.constant 0 : index
    %2 = vector.load %arg2[%c1, %c0_2, %c0_3] : memref<2x8x128xf32, #tpu.memory_space<vmem>>, vector<1x8x128xf32>
    %3 = vector.shape_cast %2 : vector<1x8x128xf32> to vector<8x128xf32>
    %c0_4 = arith.constant 0 : index
    %4 = memref.load %arg1[%c0_4] : memref<32xf32, #tpu.memory_space<smem>>
    %5 = vector.broadcast %4 : f32 to vector<8x128xf32>
    %6 = arith.mulf %1, %5 : vector<8x128xf32>
    %c4 = arith.constant 4 : index
    %7 = memref.load %arg1[%c4] : memref<32xf32, #tpu.memory_space<smem>>
    %8 = vector.broadcast %7 : f32 to vector<8x128xf32>
    %9 = arith.mulf %3, %8 : vector<8x128xf32>
    %10 = arith.addf %6, %9 : vector<8x128xf32>
    %c8 = arith.constant 8 : index
    %11 = memref.load %arg1[%c8] : memref<32xf32, #tpu.memory_space<smem>>
    %12 = vector.broadcast %11 : f32 to vector<8x128xf32>
    %13 = arith.addf %10, %12 : vector<8x128xf32>
    %14 = math.tanh %13 : vector<8x128xf32>
    %c12 = arith.constant 12 : index
    %15 = memref.load %arg1[%c12] : memref<32xf32, #tpu.memory_space<smem>>
    %16 = vector.broadcast %15 : f32 to vector<8x128xf32>
    %17 = arith.mulf %14, %16 : vector<8x128xf32>
    %c1_5 = arith.constant 1 : index
    %18 = memref.load %arg1[%c1_5] : memref<32xf32, #tpu.memory_space<smem>>
    %19 = vector.broadcast %18 : f32 to vector<8x128xf32>
    %20 = arith.mulf %1, %19 : vector<8x128xf32>
    %c5 = arith.constant 5 : index
    %21 = memref.load %arg1[%c5] : memref<32xf32, #tpu.memory_space<smem>>
    %22 = vector.broadcast %21 : f32 to vector<8x128xf32>
    %23 = arith.mulf %3, %22 : vector<8x128xf32>
    %24 = arith.addf %20, %23 : vector<8x128xf32>
    %c9 = arith.constant 9 : index
    %25 = memref.load %arg1[%c9] : memref<32xf32, #tpu.memory_space<smem>>
    %26 = vector.broadcast %25 : f32 to vector<8x128xf32>
    %27 = arith.addf %24, %26 : vector<8x128xf32>
    %28 = math.tanh %27 : vector<8x128xf32>
    %c13 = arith.constant 13 : index
    %29 = memref.load %arg1[%c13] : memref<32xf32, #tpu.memory_space<smem>>
    %30 = vector.broadcast %29 : f32 to vector<8x128xf32>
    %31 = arith.mulf %28, %30 : vector<8x128xf32>
    %32 = arith.addf %17, %31 : vector<8x128xf32>
    %c2 = arith.constant 2 : index
    %33 = memref.load %arg1[%c2] : memref<32xf32, #tpu.memory_space<smem>>
    %34 = vector.broadcast %33 : f32 to vector<8x128xf32>
    %35 = arith.mulf %1, %34 : vector<8x128xf32>
    %c6 = arith.constant 6 : index
    %36 = memref.load %arg1[%c6] : memref<32xf32, #tpu.memory_space<smem>>
    %37 = vector.broadcast %36 : f32 to vector<8x128xf32>
    %38 = arith.mulf %3, %37 : vector<8x128xf32>
    %39 = arith.addf %35, %38 : vector<8x128xf32>
    %c10 = arith.constant 10 : index
    %40 = memref.load %arg1[%c10] : memref<32xf32, #tpu.memory_space<smem>>
    %41 = vector.broadcast %40 : f32 to vector<8x128xf32>
    %42 = arith.addf %39, %41 : vector<8x128xf32>
    %43 = math.tanh %42 : vector<8x128xf32>
    %c14 = arith.constant 14 : index
    %44 = memref.load %arg1[%c14] : memref<32xf32, #tpu.memory_space<smem>>
    %45 = vector.broadcast %44 : f32 to vector<8x128xf32>
    %46 = arith.mulf %43, %45 : vector<8x128xf32>
    %47 = arith.addf %32, %46 : vector<8x128xf32>
    %c3 = arith.constant 3 : index
    %48 = memref.load %arg1[%c3] : memref<32xf32, #tpu.memory_space<smem>>
    %49 = vector.broadcast %48 : f32 to vector<8x128xf32>
    %50 = arith.mulf %1, %49 : vector<8x128xf32>
    %c7 = arith.constant 7 : index
    %51 = memref.load %arg1[%c7] : memref<32xf32, #tpu.memory_space<smem>>
    %52 = vector.broadcast %51 : f32 to vector<8x128xf32>
    %53 = arith.mulf %3, %52 : vector<8x128xf32>
    %54 = arith.addf %50, %53 : vector<8x128xf32>
    %c11 = arith.constant 11 : index
    %55 = memref.load %arg1[%c11] : memref<32xf32, #tpu.memory_space<smem>>
    %56 = vector.broadcast %55 : f32 to vector<8x128xf32>
    %57 = arith.addf %54, %56 : vector<8x128xf32>
    %58 = math.tanh %57 : vector<8x128xf32>
    %c15 = arith.constant 15 : index
    %59 = memref.load %arg1[%c15] : memref<32xf32, #tpu.memory_space<smem>>
    %60 = vector.broadcast %59 : f32 to vector<8x128xf32>
    %61 = arith.mulf %58, %60 : vector<8x128xf32>
    %62 = arith.addf %47, %61 : vector<8x128xf32>
    %c16 = arith.constant 16 : index
    %63 = memref.load %arg1[%c16] : memref<32xf32, #tpu.memory_space<smem>>
    %64 = vector.broadcast %63 : f32 to vector<8x128xf32>
    %65 = arith.addf %62, %64 : vector<8x128xf32>
    %66 = math.tanh %65 : vector<8x128xf32>
    %cst = arith.constant 5.000000e-01 : f32
    %67 = vector.broadcast %cst : f32 to vector<8x128xf32>
    %68 = arith.mulf %67, %66 : vector<8x128xf32>
    %cst_6 = arith.constant 5.000000e-01 : f32
    %69 = vector.broadcast %cst_6 : f32 to vector<8x128xf32>
    %70 = arith.addf %68, %69 : vector<8x128xf32>
    %c0_7 = arith.constant 0 : index
    %c0_8 = arith.constant 0 : index
    %71 = vector.load %arg3[%c0_7, %c0_8] : memref<8x128xf32, #tpu.memory_space<vmem>>, vector<8x128xf32>
    tpu.vector_store %arg3[%c0_7, %c0_8], %70 {strides = array<i32>} : memref<8x128xf32, #tpu.memory_space<vmem>>, vector<8x128xf32>,
    return
  }
  func.func @transform_0(%arg0: i32) -> i32 {
    %c0_i32 = arith.constant 0 : i32
    %c0_i32_0 = arith.constant 0 : i32
    return %c0_i32 : i32
  }
  func.func @transform_1(%arg0: i32) -> (i32, i32, i32) {
    %c0_i32 = arith.constant 0 : i32
    %c0_i32_0 = arith.constant 0 : i32
    %c0_i32_1 = arith.constant 0 : i32
    return %c0_i32, %arg0, %c0_i32_0 : i32, i32, i32
  }
  func.func @transform_2(%arg0: i32) -> (i32, i32) {
    %c0_i32 = arith.constant 0 : i32
    %c0_i32_0 = arith.constant 0 : i32
    return %arg0, %c0_i32 : i32, i32
  }
}

</mosaic_0001>

<llo_original>
// kernel: tpu_custom_call.1
$region0: #{tpu_custom_call.1}
  #allocation0 [shape = 'u32[]', space=smem, size = 0x4, offset = 0x4, fixed_abs, tag = 'smem constant byte address 0x4 - core index']
  #allocation1 [shape = 'u32[72,128]{1,0:T(1,128)}', space=vmem, size = 0x9000, scoped, tag = 'internal scratch']
  %s0 = inlined_call_operand.hbm [shape: f32[32], index: 0, kind: input, shape index: {}]
  %s1 = inlined_call_operand.hbm [shape: f32[2,8,128], index: 1, kind: input, shape index: {}]
  %s2 = inlined_call_operand.hbm [shape: f32[8,128], index: 2, kind: output, shape index: {}]
  %s3 = sld [smem:[#allocation0]]
  $region26: #{tpu_custom_call.1} parent=0
    _
  %s5 = ssub.s32 1, %s3
  %s6 = scalar_select 0, %s5, %s3
  $region1: #{tpu_custom_call.1} parent=0
    #allocation2 [shape = 'u8[512]{0}', space=smem, size = 0x200, scoped, tag = 'input window, operand 0, single buffered']
    #allocation3 [shape = 's32[1]{0}', space=sflag, size = 0x4, scoped, tag = 'scoped memory for tpu_custom_call.1']
    #allocation4 [shape = 's32[1]{0}', space=sflag, size = 0x4, scoped, tag = 'scoped memory for tpu_custom_call.1']
    #allocation5 [shape = 's32[1]{0}', space=sflag, size = 0x4, scoped, tag = 'scoped memory for tpu_custom_call.1']
    #allocation6 [shape = 'u8[8192]{0}', space=vmem, size = 0x2000, scoped, tag = 'input window, operand 1, single buffered']
    #allocation7 [shape = 'u8[4096]{0}', space=vmem, size = 0x1000, scoped, tag = 'output window, operand 0, single buffered']
    %7 = vsyncpa [#allocation5], 0
    %8 = vsyncpa [#allocation3], 0
    %9 = vsyncpa [#allocation4], 0
    // Predicated region
    $region2: #{tpu_custom_call.1} parent=1 // pred_check
      _
    $region3: #{tpu_custom_call.1} parent=1 // pred_check_branch
      %11 = sbr.rel (0) target = $region5
    $region4: #{tpu_custom_call.1} parent=1 // pred_region
      %13 = vsyncadd [#allocation5], 0
      %s15 = sshll.u32 %s0, 4
      %s16 = int_to_ptr.hbm [resolvable:$true] %s15
      %18 = dma.hbm_to_smem %s16, 16, [#allocation2], [#allocation5]
    $region5: #{tpu_custom_call.1} parent=1 // pred_fallthru
      _
    // Predicated region
    $region6: #{tpu_custom_call.1} parent=1 // pred_check
      _
    $region7: #{tpu_custom_call.1} parent=1 // pred_check_branch
      %20 = sbr.rel (0) target = $region9
    $region8: #{tpu_custom_call.1} parent=1 // pred_region
      %22 = vsyncadd [#allocation3], 0
      %s23 = sshll.u32 %s1, 4
      %s24 = int_to_ptr.hbm [resolvable:$true] %s23
      %s25 = sshll.u32 [#allocation6], 4
      %s26 = int_to_ptr.vmem [resolvable:$true] %s25
      %31 = dma.hbm_to_vmem [thread:$0]  %s24, 256, %s26, [#allocation3], 128, 128, 8
    $region9: #{tpu_custom_call.1} parent=1 // pred_fallthru
      _
    // Predicated region
    $region10: #{tpu_custom_call.1} parent=1 // pred_check
      _
    $region11: #{tpu_custom_call.1} parent=1 // pred_check_branch
      %33 = sbr.rel (0) target = $region13
    $region12: #{tpu_custom_call.1} parent=1 // pred_region
      %35 = dma.done [#allocation5], 16
    $region13: #{tpu_custom_call.1} parent=1 // pred_fallthru
      _
    // Predicated region
    $region14: #{tpu_custom_call.1} parent=1 // pred_check
      _
    $region15: #{tpu_custom_call.1} parent=1 // pred_check_branch
      %37 = sbr.rel (0) target = $region17
    $region16: #{tpu_custom_call.1} parent=1 // pred_region
      %39 = dma.done [#allocation3], 256
    $region17: #{tpu_custom_call.1} parent=1 // pred_fallthru
      _
    %40 = sfence
    %v41 = vld [vmem:[#allocation6] sm:$0xff]
    %s42 = scalar_lea.vmem [#allocation6], 8
    %v43 = vld [vmem:[%s42] sm:$0xff]
    %s44 = sld [smem:[#allocation2]]
    %v45 = vstv %s44
    %v46 = vmul.f32 %v41, %v45
    %s47 = sld [smem:[#allocation2 + $0x4]]
    %v48 = vstv %s47
    %v49 = vmul.f32 %v43, %v48
    %v50 = vadd.f32 %v46, %v49
    %s51 = sld [smem:[#allocation2 + $0x8]]
    %v52 = vstv %s51
    %v53 = vadd.f32 %v50, %v52
    %v54 = vtanh.pop %v53
    %s55 = sld [smem:[#allocation2 + $0xc]]
    %v56 = vstv %s55
    %v57 = vmul.f32 %v54, %v56
    %s58 = sld [smem:[#allocation2 + $0x1]]
    %v59 = vstv %s58
    %v60 = vmul.f32 %v41, %v59
    %s61 = sld [smem:[#allocation2 + $0x5]]
    %v62 = vstv %s61
    %v63 = vmul.f32 %v43, %v62
    %v64 = vadd.f32 %v60, %v63
    %s65 = sld [smem:[#allocation2 + $0x9]]
    %v66 = vstv %s65
    %v67 = vadd.f32 %v64, %v66
    %v68 = vtanh.pop %v67
    %s69 = sld [smem:[#allocation2 + $0xd]]
    %v70 = vstv %s69
    %v71 = vmul.f32 %v68, %v70
    %v72 = vadd.f32 %v57, %v71
    %s73 = sld [smem:[#allocation2 + $0x2]]
    %v74 = vstv %s73
    %v75 = vmul.f32 %v41, %v74
    %s76 = sld [smem:[#allocation2 + $0x6]]
    %v77 = vstv %s76
    %v78 = vmul.f32 %v43, %v77
    %v79 = vadd.f32 %v75, %v78
    %s80 = sld [smem:[#allocation2 + $0xa]]
    %v81 = vstv %s80
    %v82 = vadd.f32 %v79, %v81
    %v83 = vtanh.pop %v82
    %s84 = sld [smem:[#allocation2 + $0xe]]
    %v85 = vstv %s84
    %v86 = vmul.f32 %v83, %v85
    %v87 = vadd.f32 %v72, %v86
    %s88 = sld [smem:[#allocation2 + $0x3]]
    %v89 = vstv %s88
    %v90 = vmul.f32 %v41, %v89
    %s91 = sld [smem:[#allocation2 + $0x7]]
    %v92 = vstv %s91
    %v93 = vmul.f32 %v43, %v92
    %v94 = vadd.f32 %v90, %v93
    %s95 = sld [smem:[#allocation2 + $0xb]]
    %v96 = vstv %s95
    %v97 = vadd.f32 %v94, %v96
    %v98 = vtanh.pop %v97
    %s99 = sld [smem:[#allocation2 + $0xf]]
    %v100 = vstv %s99
    %v101 = vmul.f32 %v98, %v100
    %v102 = vadd.f32 %v87, %v101
    %s103 = sld [smem:[#allocation2 + $0x10]]
    %v104 = vstv %s103
    %v105 = vadd.f32 %v102, %v104
    %v106 = vtanh.pop %v105
    %v107 = vmul.f32 %v106, 0.5
    %v108 = vadd.f32 %v107, 0.5
    %109 = vst [vmem:[#allocation7] sm:$0xff] %v108
    // Predicated region
    $region18: #{tpu_custom_call.1} parent=1 // pred_check
      _
    $region19: #{tpu_custom_call.1} parent=1 // pred_check_branch
      %111 = sbr.rel (0) target = $region21
    $region20: #{tpu_custom_call.1} parent=1 // pred_region
      %113 = vsyncadd [#allocation4], 0
      %s115 = sshll.u32 [#allocation7], 4
      %s116 = int_to_ptr.vmem [resolvable:$true] %s115
      %s117 = sshll.u32 %s2, 4
      %s118 = int_to_ptr.hbm [resolvable:$true] %s117
      %120 = dma.vmem_to_hbm [thread:$0]  %s116, 128, %s118, [#allocation4]
    $region21: #{tpu_custom_call.1} parent=1 // pred_fallthru
      _
    // Predicated region
    $region22: #{tpu_custom_call.1} parent=1 // pred_check
      _
    $region23: #{tpu_custom_call.1} parent=1 // pred_check_branch
      %122 = sbr.rel (0) target = $region25
    $region24: #{tpu_custom_call.1} parent=1 // pred_region
      %124 = dma.done [#allocation4], 128
    $region25: #{tpu_custom_call.1} parent=1 // pred_fallthru
      _
    %125 = vsyncpa [#allocation3], 1
    %126 = vsyncpa [#allocation4], 1
    %127 = vsyncpa [#allocation5], 1

</llo_original>
